<compile_context>
chip_gen: v7x
topology: tpu7x:2x2x1
jax: 0.10.0
libtpu: 0.0.40
codegen_flags: <defaults>
</compile_context>

<pallas_src>
from functools import partial
import math

import jax
import jax.numpy as jnp
from jax.experimental import pallas as pl
from jax.experimental.pallas import tpu as pltpu


def _round_up(x, m):
    return ((x + m - 1) // m) * m


def _pick_tn(M):
    """Row-tile size: large tiles, but bound padding waste to <=12.5%."""
    M8 = _round_up(max(M, 1), 8)
    if M8 <= 512:
        return M8                              # single row tile, pad only to mult. of 8
    for t in (512, 256, 128, 64, 32, 16, 8):
        pad = _round_up(M, t) - M
        if 8 * pad <= _round_up(M, t):         # waste <= 12.5%
            return t
    return 8


def _pick_tr(R):
    """RFF-axis tile size.  Avoid lane padding whenever legal."""
    if R % 128 == 0:
        tr = next(t for t in (512, 256, 128) if R % t == 0)
        return tr, R
    if R <= 2048:
        # Block dim equal to the full array dim is legal even when not a 128 multiple;
        # masked stores beat 4x redundant cos work + a full post-kernel copy.
        return R, R
    R_pad = _round_up(R, 128)
    tr = next(t for t in (512, 256, 128) if R_pad % t == 0)
    return tr, R_pad


def _rff_kernel(scale_ref, x_ref, w_ref, o_ref):
    # scale_ref: (1,1) SMEM scalar = sqrt(2*outputscale/num_rff)
    # x_ref: (tn, K) row tile (K = D+1, ones column appended -> bias folded into matmul)
    # w_ref: (K, tr) weight tile (lengthscale folded in, last row = bias)
    # o_ref: (tn, tr)
    z = jnp.dot(x_ref[...], w_ref[...], preferred_element_type=jnp.float32)   # MXU
    o_ref[...] = (scale_ref[0, 0] * jnp.cos(z)).astype(o_ref.dtype)           # EUP/VPU


def random_fourier_features(X, lengthscale, weights, bias, outputscale,
                            *, matmul_dtype=None, out_dtype=None):
    """X: (..., n, D); lengthscale: (1, D) or (1, 1); weights: (D, R); bias: (R,).

    matmul_dtype: optional (e.g. jnp.bfloat16) MXU operand dtype; casts are done once
      in the wrapper.  Note: bf16 rounds the cos phase (grows ~sqrt(D)*|X|/ls), so gate
      it on downstream tolerance.
    out_dtype: output dtype (default X.dtype); bf16 halves the dominant output write.
    """
    out_dtype = X.dtype if out_dtype is None else out_dtype
    *lead, D = X.shape
    R = weights.shape[-1]
    M = math.prod(lead) if lead else 1
    K = D + 1

    # TODO(synk): batched / per-sample lengthscales (sample_shape != ()) not supported;
    # the torch module also rejects batched kernels.
    ls = jnp.asarray(lengthscale, jnp.float32).reshape(-1)
    if ls.shape[0] == 1:
        ls = jnp.broadcast_to(ls, (D,))

    compute_dtype = jnp.float32 if matmul_dtype is None else matmul_dtype

    # Fold lengthscale into the weights and bias into an extra matmul row (K = D+1).
    w_scaled = jnp.asarray(weights, jnp.float32) / ls[:, None]                 # (D, R)
    w_aug = jnp.concatenate(
        [w_scaled, jnp.asarray(bias, jnp.float32).reshape(1, R)], axis=0
    ).astype(compute_dtype)                                                    # (K, R)

    # Append the ones column to X (drives the bias row).  Cast once, in the wrapper.
    x2d = X.reshape(M, D)
    x_aug = jnp.concatenate(
        [x2d, jnp.ones((M, 1), dtype=x2d.dtype)], axis=1
    ).astype(compute_dtype)                                                    # (M, K)

    # sqrt(2*outputscale/R) as an SMEM scalar (works for traced outputscale too).
    scale = jnp.sqrt(2.0 * jnp.asarray(outputscale, jnp.float32) / R).reshape(1, 1)

    # Tiling: bounded-waste row tiles, lane padding only when unavoidable.
    tn = _pick_tn(M)
    M_pad = _round_up(M, tn)
    tr, R_pad = _pick_tr(R)

    if M_pad != M:
        x_aug = jnp.pad(x_aug, ((0, M_pad - M), (0, 0)))
    if R_pad != R:
        w_aug = jnp.pad(w_aug, ((0, 0), (0, R_pad - R)))

    # Row axis OUTER (many blocks -> v7x megacore split; X tile invariant over the
    # inner r sweep), RFF axis inner (W tiles stream with default double-buffering).
    grid = (M_pad // tn, R_pad // tr)

    # Derived VMEM budget: double-buffered X/W/out tiles + f32 matmul result, with 4x
    # headroom, capped well under v7x's 64 MiB per-TC VMEM.
    op_it = jnp.dtype(compute_dtype).itemsize
    out_it = jnp.dtype(out_dtype).itemsize
    tile_bytes = (2 * tn * K * op_it + 2 * K * tr * op_it
                  + 2 * tn * tr * out_it + tn * tr * 4)
    vmem_limit = int(min(48 * 1024 * 1024, max(8 * 1024 * 1024, 4 * tile_bytes)))

    out = pl.pallas_call(
        _rff_kernel,
        out_shape=jax.ShapeDtypeStruct((M_pad, R_pad), out_dtype),
        grid_spec=pltpu.PrefetchScalarGridSpec(
            num_scalar_prefetch=0,
            grid=grid,
            in_specs=[
                # scalar scale, whole array resident in SMEM
                pl.BlockSpec(memory_space=pltpu.MemorySpace.SMEM),
                # X row tile: invariant over the inner r sweep (fetched once per m)
                pl.BlockSpec((tn, K), lambda m, r: (m, 0)),
                # weights(+bias row): changes every inner step -> default double-buffer
                pl.BlockSpec((K, tr), lambda m, r: (0, r)),
            ],
            out_specs=pl.BlockSpec((tn, tr), lambda m, r: (m, r)),
        ),
        compiler_params=pltpu.CompilerParams(
            dimension_semantics=("parallel", "parallel"),
            vmem_limit_bytes=vmem_limit,
        ),
    )(scale, x_aug, w_aug)

    # Fast path: no padding -> no post-kernel copy.  Otherwise slice (documented cost:
    # one extra pass over the output).
    if M_pad != M or R_pad != R:
        out = out[:M, :R]
    return out.reshape(*lead, R)


if __name__ == "__main__":
    # Module config (RBF base kernel, sample_shape = ()):
    input_dim = 4
    num_rff_features = 32
    batch, n = 2, 8

    key = jax.random.PRNGKey(0)
    k_x, k_w, k_b, k_ls = jax.random.split(key, 4)

    # Deterministic "buffers" mirroring __init__:
    weights = jax.random.normal(k_w, (input_dim, num_rff_features), dtype=jnp.float32)
    bias = 2.0 * jnp.pi * jax.random.uniform(k_b, (num_rff_features,), dtype=jnp.float32)
    lengthscale = 0.5 + jax.random.uniform(k_ls, (1, input_dim), dtype=jnp.float32)
    outputscale = 1.0

    # Input X: (batch, n, input_dim)
    X = jax.random.normal(k_x, (batch, n, input_dim), dtype=jnp.float32)

    out = random_fourier_features(X, lengthscale, weights, bias, outputscale)
    out = jax.block_until_ready(out)

    # Pure-JAX reference check (quiet).
    ref = jnp.sqrt(2.0 * outputscale / num_rff_features) * jnp.cos(
        (X / lengthscale) @ weights + bias[None, None, :]
    )
    assert out.shape == (batch, n, num_rff_features)
    assert jnp.allclose(out, ref, atol=1e-5, rtol=1e-5)

    print("KERNEL_OK")
</pallas_src>

<mosaic_0001>
module attributes {stable_mosaic.version = 11 : i64} {
  func.func @_rff_kernel(%arg0: i32, %arg1: i32, %arg2: memref<1x1xf32, #tpu.memory_space<smem>>, %arg3: memref<16x5xf32, #tpu.memory_space<vmem>>, %arg4: memref<5x32xf32, #tpu.memory_space<vmem>>, %arg5: memref<16x32xf32, #tpu.memory_space<vmem>>) attributes {dimension_semantics = [#tpu.dimension_semantics<parallel>, #tpu.dimension_semantics<parallel>], iteration_bounds = array<i64: 1, 1>, scalar_prefetch = 0 : i64, scratch_operands = 0 : i64, tpu.core_type = #tpu.core_type<tc>, window_params = [{transform_indices = @transform_0, window_bounds = array<i64: 1, 1>}, {transform_indices = @transform_1, window_bounds = array<i64: 16, 5>}, {transform_indices = @transform_2, window_bounds = array<i64: 5, 32>}, {transform_indices = @transform_3, window_bounds = array<i64: 16, 32>}]} {
    %c0 = arith.constant 0 : index
    %c0_0 = arith.constant 0 : index
    %0 = vector.load %arg3[%c0, %c0_0] : memref<16x5xf32, #tpu.memory_space<vmem>>, vector<16x5xf32>
    %c0_1 = arith.constant 0 : index
    %c0_2 = arith.constant 0 : index
    %1 = vector.load %arg4[%c0_1, %c0_2] : memref<5x32xf32, #tpu.memory_space<vmem>>, vector<5x32xf32>
    %cst = arith.constant dense<0.000000e+00> : vector<16x32xf32>
    %2 = tpu.matmul %0, %1, %cst {dimension_numbers = #tpu.dot_dimension_numbers<[1], [0], [0], [1], [0, 0, 1, 1], [], []>} : vector<16x5xf32>, vector<5x32xf32>, vector<16x32xf32> -> vector<16x32xf32>
    %c0_3 = arith.constant 0 : index
    %c0_4 = arith.constant 0 : index
    %3 = memref.load %arg2[%c0_3, %c0_4] : memref<1x1xf32, #tpu.memory_space<smem>>
    %4 = math.cos %2 : vector<16x32xf32>
    %5 = vector.broadcast %3 : f32 to vector<16x32xf32>
    %6 = arith.mulf %5, %4 : vector<16x32xf32>
    %c0_5 = arith.constant 0 : index
    %c0_6 = arith.constant 0 : index
    %7 = vector.load %arg5[%c0_5, %c0_6] : memref<16x32xf32, #tpu.memory_space<vmem>>, vector<16x32xf32>
    tpu.vector_store %arg5[%c0_5, %c0_6], %6 {strides = array<i32>} : memref<16x32xf32, #tpu.memory_space<vmem>>, vector<16x32xf32>,
    return
  }
  func.func @transform_0(%arg0: i32, %arg1: i32) -> (i32, i32) {
    %c0_i32 = arith.constant 0 : i32
    %c0_i32_0 = arith.constant 0 : i32
    %c0_i32_1 = arith.constant 0 : i32
    return %c0_i32, %c0_i32_0 : i32, i32
  }
  func.func @transform_1(%arg0: i32, %arg1: i32) -> (i32, i32) {
    %c0_i32 = arith.constant 0 : i32
    %c0_i32_0 = arith.constant 0 : i32
    return %arg0, %c0_i32 : i32, i32
  }
  func.func @transform_2(%arg0: i32, %arg1: i32) -> (i32, i32) {
    %c0_i32 = arith.constant 0 : i32
    %c0_i32_0 = arith.constant 0 : i32
    return %c0_i32, %arg1 : i32, i32
  }
  func.func @transform_3(%arg0: i32, %arg1: i32) -> (i32, i32) {
    %c0_i32 = arith.constant 0 : i32
    return %arg0, %arg1 : i32, i32
  }
}

</mosaic_0001>

<llo_original>
// kernel: tpu_custom_call.1
$region0: #{tpu_custom_call.1}
  #allocation0 [shape = 'u32[]', space=smem, size = 0x4, offset = 0x4, fixed_abs, tag = 'smem constant byte address 0x4 - core index']
  #allocation1 [shape = 'u32[144,128]{1,0:T(1,128)}', space=vmem, size = 0x12000, scoped, tag = 'internal scratch']
  #allocation2 [shape = 'f32[1,1]{1,0:T(1,128)S(6)}', space=smem, size = 0x200, scoped, tag = 'scoped memory for tpu_custom_call.1']
  %s0 = inlined_call_operand.<no memory space> [shape: f32[1,1], index: 0, kind: input, shape index: {}]
  %s1 = inlined_call_operand.vmem [shape: f32[16,5], index: 1, kind: input, shape index: {}]
  %s2 = inlined_call_operand.vmem [shape: f32[5,32], index: 2, kind: input, shape index: {}]
  %s3 = inlined_call_operand.hbm [shape: f32[16,32], index: 3, kind: output, shape index: {}]
  %s4 = sld [smem:[#allocation0]]
  $region22: #{tpu_custom_call.1} parent=0
    _
  %s6 = ssub.s32 1, %s4
  %s7 = scalar_select 0, %s6, %s4
  %8 = sst [smem:[#allocation2]] %s0
  $region1: #{tpu_custom_call.1} parent=0
    #allocation3 [shape = 'u8[8192]{0}', space=vmem, size = 0x2000, scoped, tag = 'output window, operand 0, single buffered']
    #allocation4 [shape = 's32[1]{0}', space=sflag, size = 0x4, scoped, tag = 'scoped memory for tpu_custom_call.1']
    %9 = vsyncpa [#allocation4], 0
    // Predicated region
    $region2: #{tpu_custom_call.1} parent=1 // pred_check
      _
    $region3: #{tpu_custom_call.1} parent=1 // pred_check_branch
      %11 = sbr.rel (0) target = $region5
    $region4: #{tpu_custom_call.1} parent=1 // pred_region
      _
    $region5: #{tpu_custom_call.1} parent=1 // pred_fallthru
      _
    // Predicated region
    $region6: #{tpu_custom_call.1} parent=1 // pred_check
      _
    $region7: #{tpu_custom_call.1} parent=1 // pred_check_branch
      %13 = sbr.rel (0) target = $region9
    $region8: #{tpu_custom_call.1} parent=1 // pred_region
      _
    $region9: #{tpu_custom_call.1} parent=1 // pred_fallthru
      _
    // Predicated region
    $region10: #{tpu_custom_call.1} parent=1 // pred_check
      _
    $region11: #{tpu_custom_call.1} parent=1 // pred_check_branch
      %15 = sbr.rel (0) target = $region13
    $region12: #{tpu_custom_call.1} parent=1 // pred_region
      _
    $region13: #{tpu_custom_call.1} parent=1 // pred_fallthru
      _
    %v16 = vld [vmem:[%s1] sm:$0xff]
    %v17 = vld [vmem:[%s1 + $0x8] sm:$0xff]
    %v18 = vld [vmem:[%s2] sm:$0x1f]
    %vm19 = vcmask 39936
    %v21 = vsel %vm19, %v16, 0
    %v24 = vsel %vm19, %v17, 0
    %vm26 = vcmask 1044480
    %v28 = vsel %vm26, %v18, 0
    %30 = vmatprep.subr.mxu0 0.0
    %31 = vmatpush1.msra.mxu0 %v28
    %32 = vmatprep.subr.mxu0 0.0
    %33 = vmatpush1.msra.mxu0 0.0
    %34 = vmatprep.subr.mxu0 0.0
    %35 = vmatpush1.msra.mxu0 0.0
    %36 = vmatprep.subr.mxu0 0.0
    %37 = vmatpush1.msra.mxu0 0.0
    %38 = vmatprep.subr.mxu0 0.0
    %39 = vmatpush1.msra.mxu0 0.0
    %40 = vmatprep.subr.mxu0 0.0
    %41 = vmatpush1.msra.mxu0 0.0
    %42 = vmatprep.subr.mxu0 0.0
    %43 = vmatpush1.msra.mxu0 0.0
    %44 = vmatprep.subr.mxu0 0.0
    %45 = vmatpush1.msra.mxu0 0.0
    %46 = vmatprep.subr.mxu0 0.0
    %47 = vmatpush1.msra.mxu0 0.0
    %48 = vmatprep.subr.mxu0 0.0
    %49 = vmatpush1.msra.mxu0 0.0
    %50 = vmatprep.subr.mxu0 0.0
    %51 = vmatpush1.msra.mxu0 0.0
    %52 = vmatprep.subr.mxu0 0.0
    %53 = vmatpush1.msra.mxu0 0.0
    %54 = vmatprep.subr.mxu0 0.0
    %55 = vmatpush1.msra.mxu0 0.0
    %56 = vmatprep.subr.mxu0 0.0
    %57 = vmatpush1.msra.mxu0 0.0
    %58 = vmatprep.subr.mxu0 0.0
    %59 = vmatpush1.msra.mxu0 0.0
    %60 = vmatprep.subr.mxu0 0.0
    %61 = vmatpush1.msra.mxu0 0.0
    %62 = vmatprep.subr.mxu0 0.0
    %63 = vmatpush1.msra.mxu0 0.0
    %64 = vmatprep.subr.mxu0 0.0
    %65 = vmatpush1.msra.mxu0 0.0
    %66 = vmatprep.subr.mxu0 0.0
    %67 = vmatpush1.msra.mxu0 0.0
    %68 = vmatprep.subr.mxu0 0.0
    %69 = vmatpush1.msra.mxu0 0.0
    %70 = vmatprep.subr.mxu0 0.0
    %71 = vmatpush1.msra.mxu0 0.0
    %72 = vmatprep.subr.mxu0 0.0
    %73 = vmatpush1.msra.mxu0 0.0
    %74 = vmatprep.subr.mxu0 0.0
    %75 = vmatpush1.msra.mxu0 0.0
    %76 = vmatprep.subr.mxu0 0.0
    %77 = vmatpush1.msra.mxu0 0.0
    %78 = vmatprep.subr.mxu0 0.0
    %79 = vmatpush1.msra.mxu0 0.0
    %80 = vmatprep.subr.mxu0 0.0
    %81 = vmatpush1.msra.mxu0 0.0
    %82 = vmatprep.subr.mxu0 0.0
    %83 = vmatpush1.msra.mxu0 0.0
    %84 = vmatprep.subr.mxu0 0.0
    %85 = vmatpush1.msra.mxu0 0.0
    %86 = vmatprep.subr.mxu0 0.0
    %87 = vmatpush1.msra.mxu0 0.0
    %88 = vmatprep.subr.mxu0 0.0
    %89 = vmatpush1.msra.mxu0 0.0
    %90 = vmatprep.subr.mxu0 0.0
    %91 = vmatpush1.msra.mxu0 0.0
    %92 = vmatprep.subr.mxu0 0.0
    %93 = vmatpush1.msra.mxu0 0.0
    %94 = vmatprep.mubr.f32.mxu0 0.0
    %95 = vmatmul.mubr.f32.gmra.mrb[0].mxu0 %v21
    %v96 = vpop.f32.mrb[0].mxu0
    %v97 = vadd.f32 0.0, %v96
    %v98 = vpop.f32.mrb[0].mxu0
    %99 = vmatprep.mubr.f32.mxu0 0.0
    %100 = vmatmul.mubr.f32.gmra.mrb[0].mxu0 %v24
    %v101 = vpop.f32.mrb[0].mxu0
    %v102 = vadd.f32 0.0, %v101
    %v103 = vpop.f32.mrb[0].mxu0
    %104 = vdwg.mxu0
    %s105 = sld [smem:[#allocation2]]
    %v106 = vand.u32 2147483647, %v97
    %vm107 = vcmp.le.f32.partialorder %v106, 0.7853982
    %vm108 = vcmp.lt.s32.totalorder %v97, 0
    %v109 = vand.u32 %v97, 2139095040
    %v110 = vshrl.u32 %v109, 23
    %v111 = vsub.s32 %v110, 127
    %v112 = vand.u32 2147483647, %v97
    %v113 = vand.u32 %v112, 8388607
    %v114 = vor.u32 %v113, 8388608
    %v115 = vsub.s32 0, %v114
    %v116 = vadd.s32 %v111, 1
    %vm117 = vcmp.gt.s32.totalorder %v116, 0
    %v118 = vsel %vm117, %v116, 0
    %v119 = vshrl.u32 %v118, 5
    %v120 = vand.u32 %v118, 31
    %v121 = vsub.s32 32, %v120
    %v122 = vshrl.u32 683565275, %v121
    %v123 = vshll.u32 683565275, %v120
    %v124 = vshrl.u32 2475754826, %v121
    %v125 = vor.u32 %v123, %v124
    %v126 = vshll.u32 2475754826, %v120
    %v127 = vshrl.u32 2131351028, %v121
    %v128 = vor.u32 %v126, %v127
    %v129 = vshll.u32 2131351028, %v120
    %v130 = vshrl.u32 2102212464, %v121
    %v131 = vor.u32 %v129, %v130
    %v132 = vshll.u32 2102212464, %v120
    %v133 = vshrl.u32 920167782, %v121
    %v134 = vor.u32 %v132, %v133
    %v135 = vshll.u32 920167782, %v120
    %v136 = vshrl.u32 1326507024, %v121
    %v137 = vor.u32 %v135, %v136
    %vm138 = vcmp.lt.s32.totalorder %v119, 1
    %vm139 = vcmp.lt.s32.totalorder %v119, 2
    %vm140 = vcmp.lt.s32.totalorder %v119, 3
    %vm141 = vcmp.lt.s32.totalorder %v119, 4
    %v142 = vsel %vm138, %v122, %v125
    %v143 = vsel %vm141, %v131, 2102212464
    %v144 = vsel %vm140, %v128, %v143
    %v145 = vsel %vm139, %v142, %v144
    %v146 = vsel %vm138, %v125, %v128
    %v147 = vsel %vm141, %v134, 920167782
    %v148 = vsel %vm140, %v131, %v147
    %v149 = vsel %vm139, %v146, %v148
    %v150 = vsel %vm138, %v128, %v131
    %v151 = vsel %vm141, %v137, 1326507024
    %v152 = vsel %vm140, %v134, %v151
    %v153 = vsel %vm139, %v150, %v152
    %v154 = vshll.u32 %v114, 8
    %v155 = vmul.u32.u64.compose %v154, %v153
    %v156 = vextract.low.u32 %v155
    %v157 = vextract.high.u32 %v155
    %v158 = vmul.u32.u64.compose %v154, %v149
    %v159 = vextract.low.u32 %v158
    %v160 = vextract.high.u32 %v158
    %v161 = vmul.u32 %v154, %v145
    %v162 = vadd.s32 %v157, %v159
    %vm163 = vc.u32 %v157, %v159
    %v164 = vadd.s32 %v160, 1
    %v165 = vsel %vm163, %v164, %v160
    %v166 = vadd.s32 %v161, %v165
    %v167 = vadd.s32 %v166, 536870912
    %v168 = vshrl.u32 %v167, 30
    %v169 = vshll.u32 %v168, 30
    %v170 = vsub.s32 %v166, %v169
    %vm171 = vcmp.lt.s32.totalorder %v170, 0
    %v172 = vsub.s32 0, %v170
    %v173 = vsel %vm171, %v172, %v170
    %v174 = vclz %v173
    %v175 = vsub.s32 %v174, 2
    %vm176 = vcmp.gt.s32.totalorder 0, %v175
    %v177 = vsel %vm176, 0, %v175
    %v178 = vsub.s32 32, %v177
    %v179 = vshll.u32 %v170, %v177
    %v180 = vshrl.u32 %v162, %v178
    %v181 = vor.u32 %v179, %v180
    %v182 = vsub.s32 4294967266, %v177
    %v183 = vadd.s32 %v182, 127
    %v184 = vshll.u32 %v183, 23
    %v185 = vor.u32 4788187, %v184
    %v186 = vand.u32 2147483647, %v185
    %v188 = vcvt.s32.f32 %v181
    %v189 = vmul.f32 %v188, %v186
    %v190 = vxor.u32 %v189, 2147483648
    %v191 = vsel %vm108, %v190, %v189
    %v192 = vsub.s32 4, %v168
    %v193 = vsel %vm108, %v192, %v168
    %v194 = vsel %vm107, %v97, %v191
    %v195 = vsel %vm107, 0, %v193
    %v196 = vcosq.f32.pop %v194
    %v197 = vsinq.f32.pop %v194
    %vm198 = vweird.f32 %v97
    %v199 = vand.u32 %v195, 3
    %vm200 = vcmp.lt.s32.totalorder %v199, 2
    %vm201 = vcmp.eq.s32.totalorder %v199, 0
    %v202 = vxor.u32 %v197, 2147483648
    %v203 = vsel %vm201, %v196, %v202
    %vm204 = vcmp.eq.s32.totalorder %v199, 2
    %v205 = vxor.u32 %v196, 2147483648
    %v206 = vsel %vm204, %v205, %v197
    %v207 = vsel %vm200, %v203, %v206
    %v208 = vsel %vm198, nan, %v207
    %v209 = vand.u32 2147483647, %v102
    %vm210 = vcmp.le.f32.partialorder %v209, 0.7853982
    %vm211 = vcmp.lt.s32.totalorder %v102, 0
    %v212 = vand.u32 %v102, 2139095040
    %v213 = vshrl.u32 %v212, 23
    %v214 = vsub.s32 %v213, 127
    %v215 = vand.u32 2147483647, %v102
    %v216 = vand.u32 %v215, 8388607
    %v217 = vor.u32 %v216, 8388608
    %v218 = vsub.s32 0, %v217
    %v219 = vadd.s32 %v214, 1
    %vm220 = vcmp.gt.s32.totalorder %v219, 0
    %v221 = vsel %vm220, %v219, 0
    %v222 = vshrl.u32 %v221, 5
    %v223 = vand.u32 %v221, 31
    %v224 = vsub.s32 32, %v223
    %v225 = vshrl.u32 683565275, %v224
    %v226 = vshll.u32 683565275, %v223
    %v227 = vshrl.u32 2475754826, %v224
    %v228 = vor.u32 %v226, %v227
    %v229 = vshll.u32 2475754826, %v223
    %v230 = vshrl.u32 2131351028, %v224
    %v231 = vor.u32 %v229, %v230
    %v232 = vshll.u32 2131351028, %v223
    %v233 = vshrl.u32 2102212464, %v224
    %v234 = vor.u32 %v232, %v233
    %v235 = vshll.u32 2102212464, %v223
    %v236 = vshrl.u32 920167782, %v224
    %v237 = vor.u32 %v235, %v236
    %v238 = vshll.u32 920167782, %v223
    %v239 = vshrl.u32 1326507024, %v224
    %v240 = vor.u32 %v238, %v239
    %vm241 = vcmp.lt.s32.totalorder %v222, 1
    %vm242 = vcmp.lt.s32.totalorder %v222, 2
    %vm243 = vcmp.lt.s32.totalorder %v222, 3
    %vm244 = vcmp.lt.s32.totalorder %v222, 4
    %v245 = vsel %vm241, %v225, %v228
    %v246 = vsel %vm244, %v234, 2102212464
    %v247 = vsel %vm243, %v231, %v246
    %v248 = vsel %vm242, %v245, %v247
    %v249 = vsel %vm241, %v228, %v231
    %v250 = vsel %vm244, %v237, 920167782
    %v251 = vsel %vm243, %v234, %v250
    %v252 = vsel %vm242, %v249, %v251
    %v253 = vsel %vm241, %v231, %v234
    %v254 = vsel %vm244, %v240, 1326507024
    %v255 = vsel %vm243, %v237, %v254
    %v256 = vsel %vm242, %v253, %v255
    %v257 = vshll.u32 %v217, 8
    %v258 = vmul.u32.u64.compose %v257, %v256
    %v259 = vextract.low.u32 %v258
    %v260 = vextract.high.u32 %v258
    %v261 = vmul.u32.u64.compose %v257, %v252
    %v262 = vextract.low.u32 %v261
    %v263 = vextract.high.u32 %v261
    %v264 = vmul.u32 %v257, %v248
    %v265 = vadd.s32 %v260, %v262
    %vm266 = vc.u32 %v260, %v262
    %v267 = vadd.s32 %v263, 1
    %v268 = vsel %vm266, %v267, %v263
    %v269 = vadd.s32 %v264, %v268
    %v270 = vadd.s32 %v269, 536870912
    %v271 = vshrl.u32 %v270, 30
    %v272 = vshll.u32 %v271, 30
    %v273 = vsub.s32 %v269, %v272
    %vm274 = vcmp.lt.s32.totalorder %v273, 0
    %v275 = vsub.s32 0, %v273
    %v276 = vsel %vm274, %v275, %v273
    %v277 = vclz %v276
    %v278 = vsub.s32 %v277, 2
    %vm279 = vcmp.gt.s32.totalorder 0, %v278
    %v280 = vsel %vm279, 0, %v278
    %v281 = vsub.s32 32, %v280
    %v282 = vshll.u32 %v273, %v280
    %v283 = vshrl.u32 %v265, %v281
    %v284 = vor.u32 %v282, %v283
    %v285 = vsub.s32 4294967266, %v280
    %v286 = vadd.s32 %v285, 127
    %v287 = vshll.u32 %v286, 23
    %v288 = vor.u32 4788187, %v287
    %v289 = vand.u32 2147483647, %v288
    %v291 = vcvt.s32.f32 %v284
    %v292 = vmul.f32 %v291, %v289
    %v293 = vxor.u32 %v292, 2147483648
    %v294 = vsel %vm211, %v293, %v292
    %v295 = vsub.s32 4, %v271
    %v296 = vsel %vm211, %v295, %v271
    %v297 = vsel %vm210, %v102, %v294
    %v298 = vsel %vm210, 0, %v296
    %v299 = vcosq.f32.pop %v297
    %v300 = vsinq.f32.pop %v297
    %vm301 = vweird.f32 %v102
    %v302 = vand.u32 %v298, 3
    %vm303 = vcmp.lt.s32.totalorder %v302, 2
    %vm304 = vcmp.eq.s32.totalorder %v302, 0
    %v305 = vxor.u32 %v300, 2147483648
    %v306 = vsel %vm304, %v299, %v305
    %vm307 = vcmp.eq.s32.totalorder %v302, 2
    %v308 = vxor.u32 %v299, 2147483648
    %v309 = vsel %vm307, %v308, %v300
    %v310 = vsel %vm303, %v306, %v309
    %v311 = vsel %vm301, nan, %v310
    %v312 = vstv %s105
    %v313 = vmul.f32 %v312, %v208
    %v314 = vmul.f32 %v312, %v311
    %vm315 = vcmask 261120
    %316 = vst.msk [vmem:[#allocation3] sm:$0xff] %vm315, %v313
    %317 = vst.msk [vmem:[#allocation3 + $0x8] sm:$0xff] %vm315, %v314
    // Predicated region
    $region14: #{tpu_custom_call.1} parent=1 // pred_check
      _
    $region15: #{tpu_custom_call.1} parent=1 // pred_check_branch
      %319 = sbr.rel (0) target = $region17
    $region16: #{tpu_custom_call.1} parent=1 // pred_region
      %s321 = ssub.s32 256, 256
      %322 = vsyncadd [#allocation4], %s321
      %s323 = sshll.u32 [#allocation3], 4
      %s324 = int_to_ptr.vmem [resolvable:$true] %s323
      %329 = dma.vmem_to_hbm [thread:$0]  %s324, 256, %s3, [#allocation4], 128, 128, 8
    $region17: #{tpu_custom_call.1} parent=1 // pred_fallthru
      _
    // Predicated region
    $region18: #{tpu_custom_call.1} parent=1 // pred_check
      _
    $region19: #{tpu_custom_call.1} parent=1 // pred_check_branch
      %331 = sbr.rel (0) target = $region21
    $region20: #{tpu_custom_call.1} parent=1 // pred_region
      %332 = dma.done [#allocation4], 256
    $region21: #{tpu_custom_call.1} parent=1 // pred_fallthru
      _
    %333 = vsyncpa [#allocation4], 1

</llo_original>
